<compile_context>
chip_gen: v7x
topology: tpu7x:2x2x1
jax: 0.10.0
libtpu: 0.0.40
codegen_flags: <defaults>
</compile_context>

<pallas_src>
import jax
import jax.numpy as jnp
from jax.experimental import pallas as pl
from jax.experimental.pallas import tpu as pltpu


def hie_encoder_kernel(tt_ref, ev_ref, mask_ref, tau_ref,
                       wslab_ref, hslab_ref, w2_ref, out_ref):
    Bt, L = tt_ref.shape
    K = ev_ref.shape[2]
    inv_lk = 1.0 / float(L * K)

    # packed D-width weights:
    #   rows 0..3  : w_time_all, b_time_all, w_value, b_value
    #   row  4     : mean_K(k_map_time)
    #   row  5     : mean_K(emb_table)        (Event_Encoder contribution)
    #   rows 6..   : k_map_tau  (K rows)
    wt = wslab_ref[0:1, :]                 # [1, D]
    bt_ = wslab_ref[1:2, :]                # [1, D]
    wv = wslab_ref[2:3, :]                 # [1, D]
    bv = wslab_ref[3:4, :]                 # [1, D]
    kmt_mean = wslab_ref[4:5, :]           # [1, D]
    emb_mean = wslab_ref[5:6, :]           # [1, D]
    kmtau = wslab_ref[6:6 + K, :]          # [K, D]

    w1 = hslab_ref[0:1, :]                 # [1, H]
    b1 = hslab_ref[1:2, :]                 # [1, H]
    W2 = w2_ref[...]                       # [H, D]

    tt = tt_ref[...]                       # [Bt, L]
    ev = ev_ref[...]                       # [Bt, L, K]
    mask = mask_ref[...]                   # [Bt, L, K]
    tau = tau_ref[...]                     # [Bt, L, K]

    # ---- Value_Encoder contribution: mean_{l,k}((ev*w_v + b_v) * mask) -------------
    sv = jnp.sum(jnp.sum(ev * mask, axis=2), axis=1, keepdims=True) * inv_lk   # [Bt, 1]
    sm = jnp.sum(jnp.sum(mask, axis=2), axis=1, keepdims=True) * inv_lk        # [Bt, 1]
    val_mean = sv * wv + sm * bv                                               # [Bt, D]

    # ---- Time_Encoder contribution: mean_{l,k}(tem[l,d] * k_map_time[k,d]) ---------
    # column 0 = Linear(1,1)(t); columns 1.. = sin(Linear(1,D-1)(t))  (packed in wt/bt_)
    pre = tt[:, :, None] * wt[None, :, :] + bt_[None, :, :]                    # [Bt, L, D]
    col = jax.lax.broadcasted_iota(jnp.int32, pre.shape, 2)
    tem = jnp.where(col == 0, pre, jnp.sin(pre))
    tem_mean = jnp.mean(tem, axis=1) * kmt_mean                                # [Bt, D]

    # ---- MLP_Tau_Encoder contribution ----------------------------------------------
    # tau_emb = (W2 @ tanh(tau*w1+b1)) * k_map_tau * mask; mask and W2 commute with the
    # sum over L, so reduce L first and contract the tiny H axis on the VPU.
    t1 = jnp.tanh(tau[:, :, :, None] * w1[None, None, :, :]
                  + b1[None, None, :, :]) * mask[:, :, :, None]                # [Bt, L, K, H]
    a_kh = jnp.sum(t1, axis=1)                                                 # [Bt, K, H]
    b_kd = jnp.sum(a_kh[:, :, :, None] * W2[None, None, :, :], axis=2)         # [Bt, K, D]
    tau_mean = jnp.sum(b_kd * kmtau[None, :, :], axis=1) * inv_lk              # [Bt, D]

    # ---- combine (event-embedding mean is batch independent) -----------------------
    out_ref[...] = val_mean + tem_mean + tau_mean + emb_mean


def hie_encoder_forward(event_time, event_value, non_pad_mask, tau, params, *,
                        batch_tile=None):
    B, L, K = event_value.shape
    D = params["w_time_all"].shape[1]
    H = params["w_tau1"].shape[1]

    bt = batch_tile if batch_tile is not None else (B if B <= 8 else 8)
    nb = (B + bt - 1) // bt
    Bp = nb * bt
    if Bp != B:                       # pad batch so batch tiles divide evenly
        pad = Bp - B
        event_time = jnp.pad(event_time, ((0, pad), (0, 0)))
        event_value = jnp.pad(event_value, ((0, pad), (0, 0), (0, 0)))
        non_pad_mask = jnp.pad(non_pad_mask, ((0, pad), (0, 0), (0, 0)))
        tau = jnp.pad(tau, ((0, pad), (0, 0), (0, 0)))

    # Pack the ten small parameter tensors into three slabs (fewer DMA streams);
    # batch-independent means over K (k_map_time, event embedding) are precomputed here.
    wslab = jnp.concatenate([
        params["w_time_all"], params["b_time_all"],
        params["w_value"], params["b_value"],
        jnp.mean(params["k_map_time"], axis=0, keepdims=True),
        jnp.mean(params["emb_table"], axis=0, keepdims=True),
        params["k_map_tau"],
    ], axis=0).astype(jnp.float32)                                   # [6 + K, D]
    hslab = jnp.concatenate([params["w_tau1"], params["b_tau1"]], axis=0)  # [2, H]

    data3 = pl.BlockSpec((bt, L, K), lambda b: (b, 0, 0))
    out = pl.pallas_call(
        hie_encoder_kernel,
        out_shape=jax.ShapeDtypeStruct((Bp, D), jnp.float32),
        grid_spec=pltpu.PrefetchScalarGridSpec(
            num_scalar_prefetch=0,
            grid=(nb,),
            in_specs=[
                pl.BlockSpec((bt, L), lambda b: (b, 0)),        # event_time [B, L]
                data3,                                          # event_value
                data3,                                          # non_pad_mask
                data3,                                          # tau
                pl.BlockSpec((6 + K, D), lambda b: (0, 0)),     # packed D-width weights
                pl.BlockSpec((2, H), lambda b: (0, 0)),         # packed H-width weights
                pl.BlockSpec((H, D), lambda b: (0, 0)),         # W_tau2
            ],
            out_specs=pl.BlockSpec((bt, D), lambda b: (b, 0)),
        ),
        compiler_params=pltpu.CompilerParams(dimension_semantics=("parallel",)),
    )(event_time, event_value, non_pad_mask, tau, wslab, hslab, params["W_tau2"])
    return out[:B]


def reference_forward(event_time, event_value, non_pad_mask, tau, p):
    """Pure-JAX replica of the PyTorch forward (input_only path) for validation."""
    D = p["w_time_all"].shape[1]
    tt = event_time[:, :, None, None]                                     # [B,L,1,1]
    pre = tt * p["w_time_all"][0] + p["b_time_all"][0]                    # [B,L,1,D]
    col = jnp.arange(D)
    tem = jnp.where(col == 0, pre, jnp.sin(pre))
    tem_k = tem * p["k_map_time"]                                         # [B,L,K,D]

    mask4 = non_pad_mask[..., None]
    val = (event_value[..., None] * p["w_value"][0] + p["b_value"][0]) * mask4

    t1 = jnp.tanh(tau[..., None] * p["w_tau1"][0] + p["b_tau1"][0])
    tau_e = jnp.einsum("blkh,hd->blkd", t1, p["W_tau2"]) * p["k_map_tau"] * mask4

    ev_emb = p["emb_table"][None, None]                                   # [1,1,K,D]
    h0 = val + tau_e + ev_emb + tem_k                                     # [B,L,K,D]
    h0 = jnp.transpose(h0, (0, 2, 1, 3))                                  # [B,K,L,D]
    z0 = jnp.mean(h0, axis=1)                                             # mean over K
    z0 = jnp.mean(z0, axis=1)                                             # mean over L
    return z0


def make_params(key, K, D, H):
    ks = jax.random.split(key, 10)
    w_periodic = jax.random.normal(ks[0], (D - 1,), jnp.float32) * 0.5    # Linear(1, D-1)
    b_periodic = jax.random.normal(ks[1], (D - 1,), jnp.float32) * 0.1
    w_linear = jax.random.normal(ks[2], (1,), jnp.float32) * 0.5          # Linear(1, 1)
    b_linear = jax.random.normal(ks[3], (1,), jnp.float32) * 0.1
    return {
        "w_time_all": jnp.concatenate([w_linear, w_periodic]).reshape(1, D),
        "b_time_all": jnp.concatenate([b_linear, b_periodic]).reshape(1, D),
        "k_map_time": jnp.ones((K, D), jnp.float32),                      # nn.Parameter(ones)
        "w_value": (jax.random.normal(ks[4], (D,), jnp.float32) * 0.5).reshape(1, D),
        "b_value": (jax.random.normal(ks[5], (D,), jnp.float32) * 0.1).reshape(1, D),
        # Embedding rows for types 1..K (padding row 0 is never indexed by type_matrix)
        "emb_table": jax.random.normal(ks[6], (K, D), jnp.float32) * 0.5,
        "w_tau1": (jax.random.normal(ks[7], (H,), jnp.float32) * 0.5).reshape(1, H),
        "b_tau1": (jax.random.normal(ks[8], (H,), jnp.float32) * 0.1).reshape(1, H),
        "W_tau2": jax.random.normal(ks[9], (H, D), jnp.float32) * 0.3,    # Linear(H, D, no bias)
        "k_map_tau": jnp.ones((K, D), jnp.float32),                       # nn.Parameter(ones)
    }


if __name__ == "__main__":
    B, L, K, D, H = 2, 8, 4, 32, 16

    key = jax.random.PRNGKey(0)
    kp, k1, k2, k3, k4 = jax.random.split(key, 5)
    params = make_params(kp, K, D, H)

    event_time = jax.random.uniform(k1, (B, L), jnp.float32, 0.0, 10.0)
    event_value = jax.random.normal(k2, (B, L, K), jnp.float32)
    non_pad_mask = (jax.random.uniform(k3, (B, L, K)) > 0.3).astype(jnp.float32)
    tau = jax.random.uniform(k4, (B, L, K), jnp.float32, 0.0, 5.0)

    z0 = hie_encoder_forward(event_time, event_value, non_pad_mask, tau, params)
    z0 = jax.block_until_ready(z0)

    z_ref = reference_forward(event_time, event_value, non_pad_mask, tau, params)
    assert z0.shape == (B, D)
    assert jnp.allclose(z0, z_ref, rtol=1e-4, atol=1e-4), "mismatch vs JAX reference"

    print("KERNEL_OK")
</pallas_src>

<mosaic_0001>
module attributes {stable_mosaic.version = 11 : i64} {
  func.func @hie_encoder_kernel(%arg0: i32, %arg1: memref<2x8xf32, #tpu.memory_space<vmem>>, %arg2: memref<2x8x4xf32, #tpu.memory_space<vmem>>, %arg3: memref<2x8x4xf32, #tpu.memory_space<vmem>>, %arg4: memref<2x8x4xf32, #tpu.memory_space<vmem>>, %arg5: memref<10x32xf32, #tpu.memory_space<vmem>>, %arg6: memref<2x16xf32, #tpu.memory_space<vmem>>, %arg7: memref<16x32xf32, #tpu.memory_space<vmem>>, %arg8: memref<2x32xf32, #tpu.memory_space<vmem>>) attributes {dimension_semantics = [#tpu.dimension_semantics<parallel>], iteration_bounds = array<i64: 1>, scalar_prefetch = 0 : i64, scratch_operands = 0 : i64, tpu.core_type = #tpu.core_type<tc>, window_params = [{transform_indices = @transform_0, window_bounds = array<i64: 2, 8>}, {transform_indices = @transform_1, window_bounds = array<i64: 2, 8, 4>}, {transform_indices = @transform_2, window_bounds = array<i64: 2, 8, 4>}, {transform_indices = @transform_3, window_bounds = array<i64: 2, 8, 4>}, {pipeline_mode = #tpu.pipeline_mode<synchronous>, transform_indices = @transform_4, window_bounds = array<i64: 10, 32>}, {pipeline_mode = #tpu.pipeline_mode<synchronous>, transform_indices = @transform_5, window_bounds = array<i64: 2, 16>}, {pipeline_mode = #tpu.pipeline_mode<synchronous>, transform_indices = @transform_6, window_bounds = array<i64: 16, 32>}, {transform_indices = @transform_7, window_bounds = array<i64: 2, 32>}]} {
    %c0 = arith.constant 0 : index
    %c0_0 = arith.constant 0 : index
    %0 = vector.load %arg5[%c0, %c0_0] : memref<10x32xf32, #tpu.memory_space<vmem>>, vector<1x32xf32>
    %c1 = arith.constant 1 : index
    %c0_1 = arith.constant 0 : index
    %1 = vector.load %arg5[%c1, %c0_1] : memref<10x32xf32, #tpu.memory_space<vmem>>, vector<1x32xf32>
    %c2 = arith.constant 2 : index
    %c0_2 = arith.constant 0 : index
    %2 = vector.load %arg5[%c2, %c0_2] : memref<10x32xf32, #tpu.memory_space<vmem>>, vector<1x32xf32>
    %c3 = arith.constant 3 : index
    %c0_3 = arith.constant 0 : index
    %3 = vector.load %arg5[%c3, %c0_3] : memref<10x32xf32, #tpu.memory_space<vmem>>, vector<1x32xf32>
    %c4 = arith.constant 4 : index
    %c0_4 = arith.constant 0 : index
    %4 = vector.load %arg5[%c4, %c0_4] : memref<10x32xf32, #tpu.memory_space<vmem>>, vector<1x32xf32>
    %c5 = arith.constant 5 : index
    %c0_5 = arith.constant 0 : index
    %5 = vector.load %arg5[%c5, %c0_5] : memref<10x32xf32, #tpu.memory_space<vmem>>, vector<1x32xf32>
    %c6 = arith.constant 6 : index
    %c0_6 = arith.constant 0 : index
    %6 = vector.load %arg5[%c6, %c0_6] : memref<10x32xf32, #tpu.memory_space<vmem>>, vector<4x32xf32>
    %c0_7 = arith.constant 0 : index
    %c0_8 = arith.constant 0 : index
    %7 = vector.load %arg6[%c0_7, %c0_8] : memref<2x16xf32, #tpu.memory_space<vmem>>, vector<1x16xf32>
    %c1_9 = arith.constant 1 : index
    %c0_10 = arith.constant 0 : index
    %8 = vector.load %arg6[%c1_9, %c0_10] : memref<2x16xf32, #tpu.memory_space<vmem>>, vector<1x16xf32>
    %c0_11 = arith.constant 0 : index
    %c0_12 = arith.constant 0 : index
    %9 = vector.load %arg7[%c0_11, %c0_12] : memref<16x32xf32, #tpu.memory_space<vmem>>, vector<16x32xf32>
    %c0_13 = arith.constant 0 : index
    %c0_14 = arith.constant 0 : index
    %10 = vector.load %arg1[%c0_13, %c0_14] : memref<2x8xf32, #tpu.memory_space<vmem>>, vector<2x8xf32>
    %c0_15 = arith.constant 0 : index
    %c0_16 = arith.constant 0 : index
    %c0_17 = arith.constant 0 : index
    %11 = vector.load %arg2[%c0_15, %c0_16, %c0_17] : memref<2x8x4xf32, #tpu.memory_space<vmem>>, vector<2x8x4xf32>
    %c0_18 = arith.constant 0 : index
    %c0_19 = arith.constant 0 : index
    %c0_20 = arith.constant 0 : index
    %12 = vector.load %arg3[%c0_18, %c0_19, %c0_20] : memref<2x8x4xf32, #tpu.memory_space<vmem>>, vector<2x8x4xf32>
    %c0_21 = arith.constant 0 : index
    %c0_22 = arith.constant 0 : index
    %c0_23 = arith.constant 0 : index
    %13 = vector.load %arg4[%c0_21, %c0_22, %c0_23] : memref<2x8x4xf32, #tpu.memory_space<vmem>>, vector<2x8x4xf32>
    %14 = arith.mulf %11, %12 : vector<2x8x4xf32>
    %cst = arith.constant dense<0.000000e+00> : vector<2x8xf32>
    %15 = vector.multi_reduction <add>, %14, %cst [2] : vector<2x8x4xf32> to vector<2x8xf32>
    %cst_24 = arith.constant dense<0.000000e+00> : vector<2xf32>
    %16 = vector.multi_reduction <add>, %15, %cst_24 [1] : vector<2x8xf32> to vector<2xf32>
    %17 = vector.shape_cast %16 : vector<2xf32> to vector<2x1xf32>
    %cst_25 = arith.constant 3.125000e-02 : f32
    %18 = vector.broadcast %cst_25 : f32 to vector<2x1xf32>
    %19 = arith.mulf %17, %18 : vector<2x1xf32>
    %cst_26 = arith.constant dense<0.000000e+00> : vector<2x8xf32>
    %20 = vector.multi_reduction <add>, %12, %cst_26 [2] : vector<2x8x4xf32> to vector<2x8xf32>
    %cst_27 = arith.constant dense<0.000000e+00> : vector<2xf32>
    %21 = vector.multi_reduction <add>, %20, %cst_27 [1] : vector<2x8xf32> to vector<2xf32>
    %22 = vector.shape_cast %21 : vector<2xf32> to vector<2x1xf32>
    %cst_28 = arith.constant 3.125000e-02 : f32
    %23 = vector.broadcast %cst_28 : f32 to vector<2x1xf32>
    %24 = arith.mulf %22, %23 : vector<2x1xf32>
    %25 = vector.broadcast %19 : vector<2x1xf32> to vector<2x32xf32>
    %26 = vector.broadcast %2 : vector<1x32xf32> to vector<2x32xf32>
    %27 = arith.mulf %25, %26 : vector<2x32xf32>
    %28 = vector.broadcast %24 : vector<2x1xf32> to vector<2x32xf32>
    %29 = vector.broadcast %3 : vector<1x32xf32> to vector<2x32xf32>
    %30 = arith.mulf %28, %29 : vector<2x32xf32>
    %31 = arith.addf %27, %30 : vector<2x32xf32>
    %32 = vector.shape_cast %10 : vector<2x8xf32> to vector<2x8x1xf32>
    %33 = vector.shape_cast %0 : vector<1x32xf32> to vector<1x1x32xf32>
    %34 = vector.broadcast %32 : vector<2x8x1xf32> to vector<2x8x32xf32>
    %35 = vector.broadcast %33 : vector<1x1x32xf32> to vector<2x8x32xf32>
    %36 = arith.mulf %34, %35 : vector<2x8x32xf32>
    %37 = vector.shape_cast %1 : vector<1x32xf32> to vector<1x1x32xf32>
    %38 = vector.broadcast %37 : vector<1x1x32xf32> to vector<2x8x32xf32>
    %39 = arith.addf %36, %38 : vector<2x8x32xf32>
    %40 = tpu.iota {dimensions = array<i32: 2>} : vector<2x8x32xi32>
    %c0_i32 = arith.constant 0 : i32
    %41 = vector.broadcast %c0_i32 : i32 to vector<2x8x32xi32>
    %42 = arith.cmpi eq, %40, %41 : vector<2x8x32xi32>
    %43 = math.sin %39 : vector<2x8x32xf32>
    %44 = arith.select %42, %39, %43 : vector<2x8x32xi1>, vector<2x8x32xf32>
    %cst_29 = arith.constant dense<0.000000e+00> : vector<2x32xf32>
    %45 = vector.multi_reduction <add>, %44, %cst_29 [1] : vector<2x8x32xf32> to vector<2x32xf32>
    %cst_30 = arith.constant 8.000000e+00 : f32
    %46 = vector.broadcast %cst_30 : f32 to vector<2x32xf32>
    %47 = arith.divf %45, %46 : vector<2x32xf32>
    %48 = vector.broadcast %4 : vector<1x32xf32> to vector<2x32xf32>
    %49 = arith.mulf %47, %48 : vector<2x32xf32>
    %50 = vector.shape_cast %13 : vector<2x8x4xf32> to vector<2x8x4x1xf32>
    %51 = vector.shape_cast %7 : vector<1x16xf32> to vector<1x1x1x16xf32>
    %52 = vector.broadcast %50 : vector<2x8x4x1xf32> to vector<2x8x4x16xf32>
    %53 = vector.broadcast %51 : vector<1x1x1x16xf32> to vector<2x8x4x16xf32>
    %54 = arith.mulf %52, %53 : vector<2x8x4x16xf32>
    %55 = vector.shape_cast %8 : vector<1x16xf32> to vector<1x1x1x16xf32>
    %56 = vector.broadcast %55 : vector<1x1x1x16xf32> to vector<2x8x4x16xf32>
    %57 = arith.addf %54, %56 : vector<2x8x4x16xf32>
    %58 = math.tanh %57 : vector<2x8x4x16xf32>
    %59 = vector.shape_cast %12 : vector<2x8x4xf32> to vector<2x8x4x1xf32>
    %60 = vector.broadcast %59 : vector<2x8x4x1xf32> to vector<2x8x4x16xf32>
    %61 = arith.mulf %58, %60 : vector<2x8x4x16xf32>
    %cst_31 = arith.constant dense<0.000000e+00> : vector<2x4x16xf32>
    %62 = vector.multi_reduction <add>, %61, %cst_31 [1] : vector<2x8x4x16xf32> to vector<2x4x16xf32>
    %63 = vector.shape_cast %62 : vector<2x4x16xf32> to vector<2x4x16x1xf32>
    %64 = vector.shape_cast %9 : vector<16x32xf32> to vector<1x1x16x32xf32>
    %65 = vector.broadcast %63 : vector<2x4x16x1xf32> to vector<2x4x16x32xf32>
    %66 = vector.broadcast %64 : vector<1x1x16x32xf32> to vector<2x4x16x32xf32>
    %67 = arith.mulf %65, %66 : vector<2x4x16x32xf32>
    %cst_32 = arith.constant dense<0.000000e+00> : vector<2x4x32xf32>
    %68 = vector.multi_reduction <add>, %67, %cst_32 [2] : vector<2x4x16x32xf32> to vector<2x4x32xf32>
    %69 = vector.shape_cast %6 : vector<4x32xf32> to vector<1x4x32xf32>
    %70 = vector.broadcast %69 : vector<1x4x32xf32> to vector<2x4x32xf32>
    %71 = arith.mulf %68, %70 : vector<2x4x32xf32>
    %cst_33 = arith.constant dense<0.000000e+00> : vector<2x32xf32>
    %72 = vector.multi_reduction <add>, %71, %cst_33 [1] : vector<2x4x32xf32> to vector<2x32xf32>
    %cst_34 = arith.constant 3.125000e-02 : f32
    %73 = vector.broadcast %cst_34 : f32 to vector<2x32xf32>
    %74 = arith.mulf %72, %73 : vector<2x32xf32>
    %75 = arith.addf %31, %49 : vector<2x32xf32>
    %76 = arith.addf %75, %74 : vector<2x32xf32>
    %77 = vector.broadcast %5 : vector<1x32xf32> to vector<2x32xf32>
    %78 = arith.addf %76, %77 : vector<2x32xf32>
    %c0_35 = arith.constant 0 : index
    %c0_36 = arith.constant 0 : index
    %79 = vector.load %arg8[%c0_35, %c0_36] : memref<2x32xf32, #tpu.memory_space<vmem>>, vector<2x32xf32>
    tpu.vector_store %arg8[%c0_35, %c0_36], %78 {strides = array<i32>} : memref<2x32xf32, #tpu.memory_space<vmem>>, vector<2x32xf32>,
    return
  }
  func.func @transform_0(%arg0: i32) -> (i32, i32) {
    %c0_i32 = arith.constant 0 : i32
    %c0_i32_0 = arith.constant 0 : i32
    return %arg0, %c0_i32 : i32, i32
  }
  func.func @transform_1(%arg0: i32) -> (i32, i32, i32) {
    %c0_i32 = arith.constant 0 : i32
    %c0_i32_0 = arith.constant 0 : i32
    %c0_i32_1 = arith.constant 0 : i32
    return %arg0, %c0_i32, %c0_i32_0 : i32, i32, i32
  }
  func.func @transform_2(%arg0: i32) -> (i32, i32, i32) {
    %c0_i32 = arith.constant 0 : i32
    %c0_i32_0 = arith.constant 0 : i32
    %c0_i32_1 = arith.constant 0 : i32
    return %arg0, %c0_i32, %c0_i32_0 : i32, i32, i32
  }
  func.func @transform_3(%arg0: i32) -> (i32, i32, i32) {
    %c0_i32 = arith.constant 0 : i32
    %c0_i32_0 = arith.constant 0 : i32
    %c0_i32_1 = arith.constant 0 : i32
    return %arg0, %c0_i32, %c0_i32_0 : i32, i32, i32
  }
  func.func @transform_4(%arg0: i32) -> (i32, i32) {
    %c0_i32 = arith.constant 0 : i32
    %c0_i32_0 = arith.constant 0 : i32
    %c0_i32_1 = arith.constant 0 : i32
    return %c0_i32, %c0_i32_0 : i32, i32
  }
  func.func @transform_5(%arg0: i32) -> (i32, i32) {
    %c0_i32 = arith.constant 0 : i32
    %c0_i32_0 = arith.constant 0 : i32
    %c0_i32_1 = arith.constant 0 : i32
    return %c0_i32, %c0_i32_0 : i32, i32
  }
  func.func @transform_6(%arg0: i32) -> (i32, i32) {
    %c0_i32 = arith.constant 0 : i32
    %c0_i32_0 = arith.constant 0 : i32
    %c0_i32_1 = arith.constant 0 : i32
    return %c0_i32, %c0_i32_0 : i32, i32
  }
  func.func @transform_7(%arg0: i32) -> (i32, i32) {
    %c0_i32 = arith.constant 0 : i32
    %c0_i32_0 = arith.constant 0 : i32
    return %arg0, %c0_i32 : i32, i32
  }
}

</mosaic_0001>

<llo_original>
// kernel: tpu_custom_call.1
$region0: #{tpu_custom_call.1}
  #allocation0 [shape = 'u32[]', space=smem, size = 0x4, offset = 0x4, fixed_abs, tag = 'smem constant byte address 0x4 - core index']
  #allocation1 [shape = 'u32[144,128]{1,0:T(1,128)}', space=vmem, size = 0x12000, scoped, tag = 'internal scratch']
  %s0 = inlined_call_operand.vmem [shape: f32[2,8], index: 0, kind: input, shape index: {}]
  %s1 = inlined_call_operand.vmem [shape: f32[2,8,4], index: 1, kind: input, shape index: {}]
  %s2 = inlined_call_operand.vmem [shape: f32[2,8,4], index: 2, kind: input, shape index: {}]
  %s3 = inlined_call_operand.vmem [shape: f32[2,8,4], index: 3, kind: input, shape index: {}]
  %s4 = inlined_call_operand.vmem [shape: f32[10,32], index: 4, kind: input, shape index: {}]
  %s5 = inlined_call_operand.vmem [shape: f32[2,16], index: 5, kind: input, shape index: {}]
  %s6 = inlined_call_operand.vmem [shape: f32[16,32], index: 6, kind: input, shape index: {}]
  %s7 = inlined_call_operand.hbm [shape: f32[2,32], index: 7, kind: output, shape index: {}]
  %s8 = sld [smem:[#allocation0]]
  $region38: #{tpu_custom_call.1} parent=0
    _
  %s10 = ssub.s32 1, %s8
  %s11 = scalar_select 0, %s10, %s8
  $region1: #{tpu_custom_call.1} parent=0
    #allocation2 [shape = 'u8[1024]{0}', space=vmem, size = 0x400, scoped, tag = 'output window, operand 0, single buffered']
    #allocation3 [shape = 's32[1]{0}', space=sflag, size = 0x4, scoped, tag = 'scoped memory for tpu_custom_call.1']
    %12 = vsyncpa [#allocation3], 0
    // Predicated region
    $region2: #{tpu_custom_call.1} parent=1 // pred_check
      _
    $region3: #{tpu_custom_call.1} parent=1 // pred_check_branch
      %14 = sbr.rel (0) target = $region5
    $region4: #{tpu_custom_call.1} parent=1 // pred_region
      _
    $region5: #{tpu_custom_call.1} parent=1 // pred_fallthru
      _
    // Predicated region
    $region6: #{tpu_custom_call.1} parent=1 // pred_check
      _
    $region7: #{tpu_custom_call.1} parent=1 // pred_check_branch
      %16 = sbr.rel (0) target = $region9
    $region8: #{tpu_custom_call.1} parent=1 // pred_region
      _
    $region9: #{tpu_custom_call.1} parent=1 // pred_fallthru
      _
    // Predicated region
    $region10: #{tpu_custom_call.1} parent=1 // pred_check
      _
    $region11: #{tpu_custom_call.1} parent=1 // pred_check_branch
      %18 = sbr.rel (0) target = $region13
    $region12: #{tpu_custom_call.1} parent=1 // pred_region
      _
    $region13: #{tpu_custom_call.1} parent=1 // pred_fallthru
      _
    // Predicated region
    $region14: #{tpu_custom_call.1} parent=1 // pred_check
      _
    $region15: #{tpu_custom_call.1} parent=1 // pred_check_branch
      %20 = sbr.rel (0) target = $region17
    $region16: #{tpu_custom_call.1} parent=1 // pred_region
      _
    $region17: #{tpu_custom_call.1} parent=1 // pred_fallthru
      _
    // Predicated region
    $region18: #{tpu_custom_call.1} parent=1 // pred_check
      _
    $region19: #{tpu_custom_call.1} parent=1 // pred_check_branch
      %22 = sbr.rel (0) target = $region21
    $region20: #{tpu_custom_call.1} parent=1 // pred_region
      _
    $region21: #{tpu_custom_call.1} parent=1 // pred_fallthru
      _
    // Predicated region
    $region22: #{tpu_custom_call.1} parent=1 // pred_check
      _
    $region23: #{tpu_custom_call.1} parent=1 // pred_check_branch
      %24 = sbr.rel (0) target = $region25
    $region24: #{tpu_custom_call.1} parent=1 // pred_region
      _
    $region25: #{tpu_custom_call.1} parent=1 // pred_fallthru
      _
    // Predicated region
    $region26: #{tpu_custom_call.1} parent=1 // pred_check
      _
    $region27: #{tpu_custom_call.1} parent=1 // pred_check_branch
      %26 = sbr.rel (0) target = $region29
    $region28: #{tpu_custom_call.1} parent=1 // pred_region
      _
    $region29: #{tpu_custom_call.1} parent=1 // pred_fallthru
      _
    %v27 = vld [vmem:[%s4] sm:$0x1]
    %v28 = vld [vmem:[%s4 + $0x1] sm:$0x1]
    %v29 = vld [vmem:[%s4 + $0x2] sm:$0x1]
    %v30 = vld [vmem:[%s4 + $0x3] sm:$0x1]
    %v31 = vld [vmem:[%s4 + $0x4] sm:$0x1]
    %v32 = vld [vmem:[%s4 + $0x5] sm:$0x1]
    %v33 = vld [vmem:[%s4 + $0x6] sm:$0xf]
    %v34 = vld [vmem:[%s5] sm:$0x1]
    %v35 = vld [vmem:[%s5 + $0x1] sm:$0x1]
    %v36 = vld [vmem:[%s6] sm:$0xff]
    %v37 = vld [vmem:[%s6 + $0x8] sm:$0xff]
    %v38 = vld [vmem:[%s0] sm:$0x3]
    %v39 = vld [vmem:[%s1] sm:$0xff]
    %v40 = vld [vmem:[%s1 + $0x8] sm:$0xff]
    %v41 = vld [vmem:[%s2] sm:$0xff]
    %v42 = vld [vmem:[%s2 + $0x8] sm:$0xff]
    %v43 = vld [vmem:[%s3] sm:$0xff]
    %v44 = vld [vmem:[%s3 + $0x8] sm:$0xff]
    %v45 = vmul.f32 %v39, %v41
    %v46 = vmul.f32 %v40, %v42
    %vm47 = vcmask 31744
    %v48 = vsel %vm47, %v45, 0.0
    %49 = vadd.xlane.f32.xlu0 %v48
    %v50 = vpop.xlane.xlu0 %49
    %v51 = vsel %vm47, %v46, 0.0
    %52 = vadd.xlane.f32.xlu0 %v51
    %v53 = vpop.xlane.xlu0 %52
    %v56 = vlaneseq
    %v57 = vand.u32 %v56, 127
    %v58 = vlaneseq
    %v59 = vshrl.u32 %v58, 7
    %v60 = vsub.s32 %v57, %v59
    %v61 = vrot.slane %v50, %v60
    %v62 = vlaneseq
    %v63 = vshrl.u32 %v62, 7
    %v64 = vsub.s32 %v57, %v63
    %v65 = vrot.slane %v53, %v64
    %vm66 = vcmask 1041409
    %v67 = vsel %vm66, %v65, %v61
    %vm69 = vcmask 58368
    %v70 = vsel %vm69, %v67, 0.0
    %71 = vadd.xlane.f32.xlu0 %v70
    %v72 = vpop.xlane.xlu0 %71
    %v73 = vmul.f32 %v72, 0.03125
    %v74 = vsel %vm47, %v41, 0.0
    %75 = vadd.xlane.f32.xlu0 %v74
    %v76 = vpop.xlane.xlu0 %75
    %v77 = vsel %vm47, %v42, 0.0
    %78 = vadd.xlane.f32.xlu0 %v77
    %v79 = vpop.xlane.xlu0 %78
    %v82 = vlaneseq
    %v83 = vshrl.u32 %v82, 7
    %v84 = vsub.s32 %v57, %v83
    %v85 = vrot.slane %v76, %v84
    %v86 = vlaneseq
    %v87 = vshrl.u32 %v86, 7
    %v88 = vsub.s32 %v57, %v87
    %v89 = vrot.slane %v79, %v88
    %v90 = vsel %vm66, %v89, %v85
    %v92 = vsel %vm69, %v90, 0.0
    %93 = vadd.xlane.f32.xlu0 %v92
    %v94 = vpop.xlane.xlu0 %93
    %v95 = vmul.f32 %v94, 0.03125
    %v96 = vlaneseq
    %v97 = vshrl.u32 %v96, 7
    %v98 = vsub.s32 0, %v97
    %v99 = vrot.slane %v29, %v98
    %v100 = vmul.f32 %v73, %v99
    %v101 = vlaneseq
    %v102 = vshrl.u32 %v101, 7
    %v103 = vsub.s32 0, %v102
    %v104 = vrot.slane %v30, %v103
    %v105 = vmul.f32 %v95, %v104
    %v106 = vadd.f32 %v100, %v105
    %v107 = vlaneseq
    %v108 = vshrl.u32 %v107, 7
    %v109 = vsub.s32 0, %v108
    %v110 = vrot.slane %v38, %v109
    %112 = vbcast.lane.b32.xlu0 %v110, 256
    %v113 = vpop.permute.xlu0 %112
    %v114 = vlaneseq
    %v115 = vshrl.u32 %v114, 7
    %v116 = vsub.s32 1, %v115
    %v117 = vrot.slane %v38, %v116
    %119 = vbcast.lane.b32.xlu0 %v117, 256
    %v120 = vpop.permute.xlu0 %119
    %v121 = vlaneseq
    %v122 = vshrl.u32 %v121, 7
    %v123 = vsub.s32 0, %v122
    %v124 = vrot.slane %v27, %v123
    %v125 = vmul.f32 %v113, %v124
    %v126 = vmul.f32 %v120, %v124
    %v127 = vlaneseq
    %v128 = vshrl.u32 %v127, 7
    %v129 = vsub.s32 0, %v128
    %v130 = vrot.slane %v28, %v129
    %v131 = vadd.f32 %v125, %v130
    %v132 = vadd.f32 %v126, %v130
    %vm133 = vcmp.eq.s32.totalorder %v57, 0
    %v134 = vand.u32 2147483647, %v131
    %vm135 = vcmp.le.f32.partialorder %v134, 0.7853982
    %vm136 = vcmp.lt.s32.totalorder %v131, 0
    %v137 = vand.u32 %v131, 2139095040
    %v138 = vshrl.u32 %v137, 23
    %v139 = vsub.s32 %v138, 127
    %v140 = vand.u32 2147483647, %v131
    %v141 = vand.u32 %v140, 8388607
    %v142 = vor.u32 %v141, 8388608
    %v143 = vsub.s32 0, %v142
    %v144 = vadd.s32 %v139, 1
    %vm145 = vcmp.gt.s32.totalorder %v144, 0
    %v146 = vsel %vm145, %v144, 0
    %v147 = vshrl.u32 %v146, 5
    %v148 = vand.u32 %v146, 31
    %v149 = vsub.s32 32, %v148
    %v150 = vshrl.u32 683565275, %v149
    %v151 = vshll.u32 683565275, %v148
    %v152 = vshrl.u32 2475754826, %v149
    %v153 = vor.u32 %v151, %v152
    %v154 = vshll.u32 2475754826, %v148
    %v155 = vshrl.u32 2131351028, %v149
    %v156 = vor.u32 %v154, %v155
    %v157 = vshll.u32 2131351028, %v148
    %v158 = vshrl.u32 2102212464, %v149
    %v159 = vor.u32 %v157, %v158
    %v160 = vshll.u32 2102212464, %v148
    %v161 = vshrl.u32 920167782, %v149
    %v162 = vor.u32 %v160, %v161
    %v163 = vshll.u32 920167782, %v148
    %v164 = vshrl.u32 1326507024, %v149
    %v165 = vor.u32 %v163, %v164
    %vm166 = vcmp.lt.s32.totalorder %v147, 1
    %vm167 = vcmp.lt.s32.totalorder %v147, 2
    %vm168 = vcmp.lt.s32.totalorder %v147, 3
    %vm169 = vcmp.lt.s32.totalorder %v147, 4
    %v170 = vsel %vm166, %v150, %v153
    %v171 = vsel %vm169, %v159, 2102212464
    %v172 = vsel %vm168, %v156, %v171
    %v173 = vsel %vm167, %v170, %v172
    %v174 = vsel %vm166, %v153, %v156
    %v175 = vsel %vm169, %v162, 920167782
    %v176 = vsel %vm168, %v159, %v175
    %v177 = vsel %vm167, %v174, %v176
    %v178 = vsel %vm166, %v156, %v159
    %v179 = vsel %vm169, %v165, 1326507024
    %v180 = vsel %vm168, %v162, %v179
    %v181 = vsel %vm167, %v178, %v180
    %v182 = vshll.u32 %v142, 8
    %v183 = vmul.u32.u64.compose %v182, %v181
    %v184 = vextract.low.u32 %v183
    %v185 = vextract.high.u32 %v183
    %v186 = vmul.u32.u64.compose %v182, %v177
    %v187 = vextract.low.u32 %v186
    %v188 = vextract.high.u32 %v186
    %v189 = vmul.u32 %v182, %v173
    %v190 = vadd.s32 %v185, %v187
    %vm191 = vc.u32 %v185, %v187
    %v192 = vadd.s32 %v188, 1
    %v193 = vsel %vm191, %v192, %v188
    %v194 = vadd.s32 %v189, %v193
    %v195 = vadd.s32 %v194, 536870912
    %v196 = vshrl.u32 %v195, 30
    %v197 = vshll.u32 %v196, 30
    %v198 = vsub.s32 %v194, %v197
    %vm199 = vcmp.lt.s32.totalorder %v198, 0
    %v200 = vsub.s32 0, %v198
    %v201 = vsel %vm199, %v200, %v198
    %v202 = vclz %v201
    %v203 = vsub.s32 %v202, 2
    %vm204 = vcmp.gt.s32.totalorder 0, %v203
    %v205 = vsel %vm204, 0, %v203
    %v206 = vsub.s32 32, %v205
    %v207 = vshll.u32 %v198, %v205
    %v208 = vshrl.u32 %v190, %v206
    %v209 = vor.u32 %v207, %v208
    %v210 = vsub.s32 4294967266, %v205
    %v211 = vadd.s32 %v210, 127
    %v212 = vshll.u32 %v211, 23
    %v213 = vor.u32 4788187, %v212
    %v214 = vand.u32 2147483647, %v213
    %v216 = vcvt.s32.f32 %v209
    %v217 = vmul.f32 %v216, %v214
    %v218 = vxor.u32 %v217, 2147483648
    %v219 = vsel %vm136, %v218, %v217
    %v220 = vsub.s32 4, %v196
    %v221 = vsel %vm136, %v220, %v196
    %v222 = vsel %vm135, %v131, %v219
    %v223 = vsel %vm135, 0, %v221
    %v224 = vcosq.f32.pop %v222
    %v225 = vsinq.f32.pop %v222
    %vm226 = vweird.f32 %v131
    %v227 = vadd.s32 %v223, 3
    %v228 = vand.u32 %v227, 3
    %vm229 = vcmp.lt.s32.totalorder %v228, 2
    %vm230 = vcmp.eq.s32.totalorder %v228, 0
    %v231 = vxor.u32 %v225, 2147483648
    %v232 = vsel %vm230, %v224, %v231
    %vm233 = vcmp.eq.s32.totalorder %v228, 2
    %v234 = vxor.u32 %v224, 2147483648
    %v235 = vsel %vm233, %v234, %v225
    %v236 = vsel %vm229, %v232, %v235
    %v237 = vsel %vm226, nan, %v236
    %v238 = vand.u32 2147483647, %v132
    %vm239 = vcmp.le.f32.partialorder %v238, 0.7853982
    %vm240 = vcmp.lt.s32.totalorder %v132, 0
    %v241 = vand.u32 %v132, 2139095040
    %v242 = vshrl.u32 %v241, 23
    %v243 = vsub.s32 %v242, 127
    %v244 = vand.u32 2147483647, %v132
    %v245 = vand.u32 %v244, 8388607
    %v246 = vor.u32 %v245, 8388608
    %v247 = vsub.s32 0, %v246
    %v248 = vadd.s32 %v243, 1
    %vm249 = vcmp.gt.s32.totalorder %v248, 0
    %v250 = vsel %vm249, %v248, 0
    %v251 = vshrl.u32 %v250, 5
    %v252 = vand.u32 %v250, 31
    %v253 = vsub.s32 32, %v252
    %v254 = vshrl.u32 683565275, %v253
    %v255 = vshll.u32 683565275, %v252
    %v256 = vshrl.u32 2475754826, %v253
    %v257 = vor.u32 %v255, %v256
    %v258 = vshll.u32 2475754826, %v252
    %v259 = vshrl.u32 2131351028, %v253
    %v260 = vor.u32 %v258, %v259
    %v261 = vshll.u32 2131351028, %v252
    %v262 = vshrl.u32 2102212464, %v253
    %v263 = vor.u32 %v261, %v262
    %v264 = vshll.u32 2102212464, %v252
    %v265 = vshrl.u32 920167782, %v253
    %v266 = vor.u32 %v264, %v265
    %v267 = vshll.u32 920167782, %v252
    %v268 = vshrl.u32 1326507024, %v253
    %v269 = vor.u32 %v267, %v268
    %vm270 = vcmp.lt.s32.totalorder %v251, 1
    %vm271 = vcmp.lt.s32.totalorder %v251, 2
    %vm272 = vcmp.lt.s32.totalorder %v251, 3
    %vm273 = vcmp.lt.s32.totalorder %v251, 4
    %v274 = vsel %vm270, %v254, %v257
    %v275 = vsel %vm273, %v263, 2102212464
    %v276 = vsel %vm272, %v260, %v275
    %v277 = vsel %vm271, %v274, %v276
    %v278 = vsel %vm270, %v257, %v260
    %v279 = vsel %vm273, %v266, 920167782
    %v280 = vsel %vm272, %v263, %v279
    %v281 = vsel %vm271, %v278, %v280
    %v282 = vsel %vm270, %v260, %v263
    %v283 = vsel %vm273, %v269, 1326507024
    %v284 = vsel %vm272, %v266, %v283
    %v285 = vsel %vm271, %v282, %v284
    %v286 = vshll.u32 %v246, 8
    %v287 = vmul.u32.u64.compose %v286, %v285
    %v288 = vextract.low.u32 %v287
    %v289 = vextract.high.u32 %v287
    %v290 = vmul.u32.u64.compose %v286, %v281
    %v291 = vextract.low.u32 %v290
    %v292 = vextract.high.u32 %v290
    %v293 = vmul.u32 %v286, %v277
    %v294 = vadd.s32 %v289, %v291
    %vm295 = vc.u32 %v289, %v291
    %v296 = vadd.s32 %v292, 1
    %v297 = vsel %vm295, %v296, %v292
    %v298 = vadd.s32 %v293, %v297
    %v299 = vadd.s32 %v298, 536870912
    %v300 = vshrl.u32 %v299, 30
    %v301 = vshll.u32 %v300, 30
    %v302 = vsub.s32 %v298, %v301
    %vm303 = vcmp.lt.s32.totalorder %v302, 0
    %v304 = vsub.s32 0, %v302
    %v305 = vsel %vm303, %v304, %v302
    %v306 = vclz %v305
    %v307 = vsub.s32 %v306, 2
    %vm308 = vcmp.gt.s32.totalorder 0, %v307
    %v309 = vsel %vm308, 0, %v307
    %v310 = vsub.s32 32, %v309
    %v311 = vshll.u32 %v302, %v309
    %v312 = vshrl.u32 %v294, %v310
    %v313 = vor.u32 %v311, %v312
    %v314 = vsub.s32 4294967266, %v309
    %v315 = vadd.s32 %v314, 127
    %v316 = vshll.u32 %v315, 23
    %v317 = vor.u32 4788187, %v316
    %v318 = vand.u32 2147483647, %v317
    %v320 = vcvt.s32.f32 %v313
    %v321 = vmul.f32 %v320, %v318
    %v322 = vxor.u32 %v321, 2147483648
    %v323 = vsel %vm240, %v322, %v321
    %v324 = vsub.s32 4, %v300
    %v325 = vsel %vm240, %v324, %v300
    %v326 = vsel %vm239, %v132, %v323
    %v327 = vsel %vm239, 0, %v325
    %v328 = vcosq.f32.pop %v326
    %v329 = vsinq.f32.pop %v326
    %vm330 = vweird.f32 %v132
    %v331 = vadd.s32 %v327, 3
    %v332 = vand.u32 %v331, 3
    %vm333 = vcmp.lt.s32.totalorder %v332, 2
    %vm334 = vcmp.eq.s32.totalorder %v332, 0
    %v335 = vxor.u32 %v329, 2147483648
    %v336 = vsel %vm334, %v328, %v335
    %vm337 = vcmp.eq.s32.totalorder %v332, 2
    %v338 = vxor.u32 %v328, 2147483648
    %v339 = vsel %vm337, %v338, %v329
    %v340 = vsel %vm333, %v336, %v339
    %v341 = vsel %vm330, nan, %v340
    %v342 = vsel %vm133, %v131, %v237
    %v343 = vsel %vm133, %v132, %v341
    %vm344 = vcmask 261120
    %v345 = vsel %vm344, %v342, 0.0
    %v346 = vrot.slane %v345, 4
    %v347 = vadd.f32 %v345, %v346
    %v348 = vrot.slane %v347, 2
    %v349 = vadd.f32 %v347, %v348
    %v350 = vrot.slane %v349, 1
    %v351 = vadd.f32 %v349, %v350
    %v352 = vsel %vm344, %v343, 0.0
    %v353 = vrot.slane %v352, 4
    %v354 = vadd.f32 %v352, %v353
    %v355 = vrot.slane %v354, 2
    %v356 = vadd.f32 %v354, %v355
    %v357 = vrot.slane %v356, 1
    %v358 = vadd.f32 %v356, %v357
    %v359 = vrcp.pop 8.0
    %v360 = vmul.f32 %v351, %v359
    %v361 = vmul.f32 %v358, %v359
    %v362 = vlaneseq
    %v363 = vshrl.u32 %v362, 7
    %v364 = vsub.s32 0, %v363
    %v365 = vrot.slane %v31, %v364
    %v366 = vmul.f32 %v360, %v365
    %v367 = vmul.f32 %v361, %v365
    %v368 = vlaneseq
    %v369 = vshrl.u32 %v368, 7
    %v370 = vsub.s32 0, %v369
    %v371 = vrot.slane %v43, %v370
    %373 = vbcast.lane.b32.xlu0 %v371, 256
    %v374 = vpop.permute.xlu0 %373
    %v375 = vlaneseq
    %v376 = vshrl.u32 %v375, 7
    %v377 = vsub.s32 1, %v376
    %v378 = vrot.slane %v43, %v377
    %380 = vbcast.lane.b32.xlu0 %v378, 256
    %v381 = vpop.permute.xlu0 %380
    %v382 = vlaneseq
    %v383 = vshrl.u32 %v382, 7
    %v384 = vsub.s32 2, %v383
    %v385 = vrot.slane %v43, %v384
    %387 = vbcast.lane.b32.xlu0 %v385, 256
    %v388 = vpop.permute.xlu0 %387
    %v389 = vlaneseq
    %v390 = vshrl.u32 %v389, 7
    %v391 = vsub.s32 3, %v390
    %v392 = vrot.slane %v43, %v391
    %394 = vbcast.lane.b32.xlu0 %v392, 256
    %v395 = vpop.permute.xlu0 %394
    %v396 = vlaneseq
    %v397 = vshrl.u32 %v396, 7
    %v398 = vsub.s32 4, %v397
    %v399 = vrot.slane %v43, %v398
    %401 = vbcast.lane.b32.xlu0 %v399, 256
    %v402 = vpop.permute.xlu0 %401
    %v403 = vlaneseq
    %v404 = vshrl.u32 %v403, 7
    %v405 = vsub.s32 5, %v404
    %v406 = vrot.slane %v43, %v405
    %408 = vbcast.lane.b32.xlu0 %v406, 256
    %v409 = vpop.permute.xlu0 %408
    %v410 = vlaneseq
    %v411 = vshrl.u32 %v410, 7
    %v412 = vsub.s32 6, %v411
    %v413 = vrot.slane %v43, %v412
    %415 = vbcast.lane.b32.xlu0 %v413, 256
    %v416 = vpop.permute.xlu0 %415
    %v417 = vlaneseq
    %v418 = vshrl.u32 %v417, 7
    %v419 = vsub.s32 7, %v418
    %v420 = vrot.slane %v43, %v419
    %422 = vbcast.lane.b32.xlu0 %v420, 256
    %v423 = vpop.permute.xlu0 %422
    %v424 = vlaneseq
    %v425 = vshrl.u32 %v424, 7
    %v426 = vsub.s32 0, %v425
    %v427 = vrot.slane %v44, %v426
    %429 = vbcast.lane.b32.xlu0 %v427, 256
    %v430 = vpop.permute.xlu0 %429
    %v431 = vlaneseq
    %v432 = vshrl.u32 %v431, 7
    %v433 = vsub.s32 1, %v432
    %v434 = vrot.slane %v44, %v433
    %436 = vbcast.lane.b32.xlu0 %v434, 256
    %v437 = vpop.permute.xlu0 %436
    %v438 = vlaneseq
    %v439 = vshrl.u32 %v438, 7
    %v440 = vsub.s32 2, %v439
    %v441 = vrot.slane %v44, %v440
    %443 = vbcast.lane.b32.xlu0 %v441, 256
    %v444 = vpop.permute.xlu0 %443
    %v445 = vlaneseq
    %v446 = vshrl.u32 %v445, 7
    %v447 = vsub.s32 3, %v446
    %v448 = vrot.slane %v44, %v447
    %450 = vbcast.lane.b32.xlu0 %v448, 256
    %v451 = vpop.permute.xlu0 %450
    %v452 = vlaneseq
    %v453 = vshrl.u32 %v452, 7
    %v454 = vsub.s32 4, %v453
    %v455 = vrot.slane %v44, %v454
    %457 = vbcast.lane.b32.xlu0 %v455, 256
    %v458 = vpop.permute.xlu0 %457
    %v459 = vlaneseq
    %v460 = vshrl.u32 %v459, 7
    %v461 = vsub.s32 5, %v460
    %v462 = vrot.slane %v44, %v461
    %464 = vbcast.lane.b32.xlu0 %v462, 256
    %v465 = vpop.permute.xlu0 %464
    %v466 = vlaneseq
    %v467 = vshrl.u32 %v466, 7
    %v468 = vsub.s32 6, %v467
    %v469 = vrot.slane %v44, %v468
    %471 = vbcast.lane.b32.xlu0 %v469, 256
    %v472 = vpop.permute.xlu0 %471
    %v473 = vlaneseq
    %v474 = vshrl.u32 %v473, 7
    %v475 = vsub.s32 7, %v474
    %v476 = vrot.slane %v44, %v475
    %478 = vbcast.lane.b32.xlu0 %v476, 256
    %v479 = vpop.permute.xlu0 %478
    %v480 = vlaneseq
    %v481 = vshrl.u32 %v480, 7
    %v482 = vsub.s32 0, %v481
    %v483 = vrot.slane %v34, %v482
    %v484 = vmul.f32 %v374, %v483
    %v485 = vmul.f32 %v381, %v483
    %v486 = vmul.f32 %v388, %v483
    %v487 = vmul.f32 %v395, %v483
    %v488 = vmul.f32 %v402, %v483
    %v489 = vmul.f32 %v409, %v483
    %v490 = vmul.f32 %v416, %v483
    %v491 = vmul.f32 %v423, %v483
    %v492 = vmul.f32 %v430, %v483
    %v493 = vmul.f32 %v437, %v483
    %v494 = vmul.f32 %v444, %v483
    %v495 = vmul.f32 %v451, %v483
    %v496 = vmul.f32 %v458, %v483
    %v497 = vmul.f32 %v465, %v483
    %v498 = vmul.f32 %v472, %v483
    %v499 = vmul.f32 %v479, %v483
    %v500 = vlaneseq
    %v501 = vshrl.u32 %v500, 7
    %v502 = vsub.s32 0, %v501
    %v503 = vrot.slane %v35, %v502
    %v504 = vadd.f32 %v484, %v503
    %v505 = vadd.f32 %v485, %v503
    %v506 = vadd.f32 %v486, %v503
    %v507 = vadd.f32 %v487, %v503
    %v508 = vadd.f32 %v488, %v503
    %v509 = vadd.f32 %v489, %v503
    %v510 = vadd.f32 %v490, %v503
    %v511 = vadd.f32 %v491, %v503
    %v512 = vadd.f32 %v492, %v503
    %v513 = vadd.f32 %v493, %v503
    %v514 = vadd.f32 %v494, %v503
    %v515 = vadd.f32 %v495, %v503
    %v516 = vadd.f32 %v496, %v503
    %v517 = vadd.f32 %v497, %v503
    %v518 = vadd.f32 %v498, %v503
    %v519 = vadd.f32 %v499, %v503
    %v520 = vtanh.pop %v504
    %v521 = vtanh.pop %v505
    %v522 = vtanh.pop %v506
    %v523 = vtanh.pop %v507
    %v524 = vtanh.pop %v508
    %v525 = vtanh.pop %v509
    %v526 = vtanh.pop %v510
    %v527 = vtanh.pop %v511
    %v528 = vtanh.pop %v512
    %v529 = vtanh.pop %v513
    %v530 = vtanh.pop %v514
    %v531 = vtanh.pop %v515
    %v532 = vtanh.pop %v516
    %v533 = vtanh.pop %v517
    %v534 = vtanh.pop %v518
    %v535 = vtanh.pop %v519
    %v536 = vlaneseq
    %v537 = vshrl.u32 %v536, 7
    %v538 = vsub.s32 0, %v537
    %v539 = vrot.slane %v41, %v538
    %541 = vbcast.lane.b32.xlu0 %v539, 256
    %v542 = vpop.permute.xlu0 %541
    %v543 = vlaneseq
    %v544 = vshrl.u32 %v543, 7
    %v545 = vsub.s32 1, %v544
    %v546 = vrot.slane %v41, %v545
    %548 = vbcast.lane.b32.xlu0 %v546, 256
    %v549 = vpop.permute.xlu0 %548
    %v550 = vlaneseq
    %v551 = vshrl.u32 %v550, 7
    %v552 = vsub.s32 2, %v551
    %v553 = vrot.slane %v41, %v552
    %555 = vbcast.lane.b32.xlu0 %v553, 256
    %v556 = vpop.permute.xlu0 %555
    %v557 = vlaneseq
    %v558 = vshrl.u32 %v557, 7
    %v559 = vsub.s32 3, %v558
    %v560 = vrot.slane %v41, %v559
    %562 = vbcast.lane.b32.xlu0 %v560, 256
    %v563 = vpop.permute.xlu0 %562
    %v564 = vlaneseq
    %v565 = vshrl.u32 %v564, 7
    %v566 = vsub.s32 4, %v565
    %v567 = vrot.slane %v41, %v566
    %569 = vbcast.lane.b32.xlu0 %v567, 256
    %v570 = vpop.permute.xlu0 %569
    %v571 = vlaneseq
    %v572 = vshrl.u32 %v571, 7
    %v573 = vsub.s32 5, %v572
    %v574 = vrot.slane %v41, %v573
    %576 = vbcast.lane.b32.xlu0 %v574, 256
    %v577 = vpop.permute.xlu0 %576
    %v578 = vlaneseq
    %v579 = vshrl.u32 %v578, 7
    %v580 = vsub.s32 6, %v579
    %v581 = vrot.slane %v41, %v580
    %583 = vbcast.lane.b32.xlu0 %v581, 256
    %v584 = vpop.permute.xlu0 %583
    %v585 = vlaneseq
    %v586 = vshrl.u32 %v585, 7
    %v587 = vsub.s32 7, %v586
    %v588 = vrot.slane %v41, %v587
    %590 = vbcast.lane.b32.xlu0 %v588, 256
    %v591 = vpop.permute.xlu0 %590
    %v592 = vlaneseq
    %v593 = vshrl.u32 %v592, 7
    %v594 = vsub.s32 0, %v593
    %v595 = vrot.slane %v42, %v594
    %597 = vbcast.lane.b32.xlu0 %v595, 256
    %v598 = vpop.permute.xlu0 %597
    %v599 = vlaneseq
    %v600 = vshrl.u32 %v599, 7
    %v601 = vsub.s32 1, %v600
    %v602 = vrot.slane %v42, %v601
    %604 = vbcast.lane.b32.xlu0 %v602, 256
    %v605 = vpop.permute.xlu0 %604
    %v606 = vlaneseq
    %v607 = vshrl.u32 %v606, 7
    %v608 = vsub.s32 2, %v607
    %v609 = vrot.slane %v42, %v608
    %611 = vbcast.lane.b32.xlu0 %v609, 256
    %v612 = vpop.permute.xlu0 %611
    %v613 = vlaneseq
    %v614 = vshrl.u32 %v613, 7
    %v615 = vsub.s32 3, %v614
    %v616 = vrot.slane %v42, %v615
    %618 = vbcast.lane.b32.xlu0 %v616, 256
    %v619 = vpop.permute.xlu0 %618
    %v620 = vlaneseq
    %v621 = vshrl.u32 %v620, 7
    %v622 = vsub.s32 4, %v621
    %v623 = vrot.slane %v42, %v622
    %625 = vbcast.lane.b32.xlu0 %v623, 256
    %v626 = vpop.permute.xlu0 %625
    %v627 = vlaneseq
    %v628 = vshrl.u32 %v627, 7
    %v629 = vsub.s32 5, %v628
    %v630 = vrot.slane %v42, %v629
    %632 = vbcast.lane.b32.xlu0 %v630, 256
    %v633 = vpop.permute.xlu0 %632
    %v634 = vlaneseq
    %v635 = vshrl.u32 %v634, 7
    %v636 = vsub.s32 6, %v635
    %v637 = vrot.slane %v42, %v636
    %639 = vbcast.lane.b32.xlu0 %v637, 256
    %v640 = vpop.permute.xlu0 %639
    %v641 = vlaneseq
    %v642 = vshrl.u32 %v641, 7
    %v643 = vsub.s32 7, %v642
    %v644 = vrot.slane %v42, %v643
    %646 = vbcast.lane.b32.xlu0 %v644, 256
    %v647 = vpop.permute.xlu0 %646
    %v648 = vmul.f32 %v520, %v542
    %v649 = vmul.f32 %v521, %v549
    %v650 = vmul.f32 %v522, %v556
    %v651 = vmul.f32 %v523, %v563
    %v652 = vmul.f32 %v524, %v570
    %v653 = vmul.f32 %v525, %v577
    %v654 = vmul.f32 %v526, %v584
    %v655 = vmul.f32 %v527, %v591
    %v656 = vmul.f32 %v528, %v598
    %v657 = vmul.f32 %v529, %v605
    %v658 = vmul.f32 %v530, %v612
    %v659 = vmul.f32 %v531, %v619
    %v660 = vmul.f32 %v532, %v626
    %v661 = vmul.f32 %v533, %v633
    %v662 = vmul.f32 %v534, %v640
    %v663 = vmul.f32 %v535, %v647
    %vm664 = vcmask 125952
    %v665 = vsel %vm664, %v648, 0.0
    %v666 = vsel %vm664, %v649, 0.0
    %v667 = vadd.f32 %v665, %v666
    %v668 = vsel %vm664, %v650, 0.0
    %v669 = vadd.f32 %v667, %v668
    %v670 = vsel %vm664, %v651, 0.0
    %v671 = vadd.f32 %v669, %v670
    %v672 = vsel %vm664, %v652, 0.0
    %v673 = vadd.f32 %v671, %v672
    %v674 = vsel %vm664, %v653, 0.0
    %v675 = vadd.f32 %v673, %v674
    %v676 = vsel %vm664, %v654, 0.0
    %v677 = vadd.f32 %v675, %v676
    %v678 = vsel %vm664, %v655, 0.0
    %v679 = vadd.f32 %v677, %v678
    %v680 = vsel %vm664, %v656, 0.0
    %v681 = vsel %vm664, %v657, 0.0
    %v682 = vadd.f32 %v680, %v681
    %v683 = vsel %vm664, %v658, 0.0
    %v684 = vadd.f32 %v682, %v683
    %v685 = vsel %vm664, %v659, 0.0
    %v686 = vadd.f32 %v684, %v685
    %v687 = vsel %vm664, %v660, 0.0
    %v688 = vadd.f32 %v686, %v687
    %v689 = vsel %vm664, %v661, 0.0
    %v690 = vadd.f32 %v688, %v689
    %v691 = vsel %vm664, %v662, 0.0
    %v692 = vadd.f32 %v690, %v691
    %v693 = vsel %vm664, %v663, 0.0
    %v694 = vadd.f32 %v692, %v693
    %v695 = vlaneseq
    %v696 = vshrl.u32 %v695, 7
    %v697 = vsub.s32 0, %v696
    %v698 = vrot.slane %v679, %v697
    %700 = vbcast.lane.b32.xlu0 %v698, 256
    %v701 = vpop.permute.xlu0 %700
    %s703 = sor.u32 256, 8
    %704 = vbcast.lane.b32.xlu0 %v698, %s703
    %v705 = vpop.permute.xlu0 %704
    %v706 = vlaneseq
    %v707 = vshrl.u32 %v706, 7
    %v708 = vsub.s32 1, %v707
    %v709 = vrot.slane %v679, %v708
    %711 = vbcast.lane.b32.xlu0 %v709, 256
    %v712 = vpop.permute.xlu0 %711
    %s714 = sor.u32 256, 8
    %715 = vbcast.lane.b32.xlu0 %v709, %s714
    %v716 = vpop.permute.xlu0 %715
    %v717 = vlaneseq
    %v718 = vshrl.u32 %v717, 7
    %v719 = vsub.s32 2, %v718
    %v720 = vrot.slane %v679, %v719
    %722 = vbcast.lane.b32.xlu0 %v720, 256
    %v723 = vpop.permute.xlu0 %722
    %s725 = sor.u32 256, 8
    %726 = vbcast.lane.b32.xlu0 %v720, %s725
    %v727 = vpop.permute.xlu0 %726
    %v728 = vlaneseq
    %v729 = vshrl.u32 %v728, 7
    %v730 = vsub.s32 3, %v729
    %v731 = vrot.slane %v679, %v730
    %733 = vbcast.lane.b32.xlu0 %v731, 256
    %v734 = vpop.permute.xlu0 %733
    %s736 = sor.u32 256, 8
    %737 = vbcast.lane.b32.xlu0 %v731, %s736
    %v738 = vpop.permute.xlu0 %737
    %v739 = vlaneseq
    %v740 = vshrl.u32 %v739, 7
    %v741 = vsub.s32 0, %v740
    %v742 = vrot.slane %v694, %v741
    %744 = vbcast.lane.b32.xlu0 %v742, 256
    %v745 = vpop.permute.xlu0 %744
    %s747 = sor.u32 256, 8
    %748 = vbcast.lane.b32.xlu0 %v742, %s747
    %v749 = vpop.permute.xlu0 %748
    %v750 = vlaneseq
    %v751 = vshrl.u32 %v750, 7
    %v752 = vsub.s32 1, %v751
    %v753 = vrot.slane %v694, %v752
    %755 = vbcast.lane.b32.xlu0 %v753, 256
    %v756 = vpop.permute.xlu0 %755
    %s758 = sor.u32 256, 8
    %759 = vbcast.lane.b32.xlu0 %v753, %s758
    %v760 = vpop.permute.xlu0 %759
    %v761 = vlaneseq
    %v762 = vshrl.u32 %v761, 7
    %v763 = vsub.s32 2, %v762
    %v764 = vrot.slane %v694, %v763
    %766 = vbcast.lane.b32.xlu0 %v764, 256
    %v767 = vpop.permute.xlu0 %766
    %s769 = sor.u32 256, 8
    %770 = vbcast.lane.b32.xlu0 %v764, %s769
    %v771 = vpop.permute.xlu0 %770
    %v772 = vlaneseq
    %v773 = vshrl.u32 %v772, 7
    %v774 = vsub.s32 3, %v773
    %v775 = vrot.slane %v694, %v774
    %777 = vbcast.lane.b32.xlu0 %v775, 256
    %v778 = vpop.permute.xlu0 %777
    %s780 = sor.u32 256, 8
    %781 = vbcast.lane.b32.xlu0 %v775, %s780
    %v782 = vpop.permute.xlu0 %781
    %v783 = vmul.f32 %v701, %v36
    %v784 = vmul.f32 %v705, %v37
    %v785 = vmul.f32 %v712, %v36
    %v786 = vmul.f32 %v716, %v37
    %v787 = vmul.f32 %v723, %v36
    %v788 = vmul.f32 %v727, %v37
    %v789 = vmul.f32 %v734, %v36
    %v790 = vmul.f32 %v738, %v37
    %v791 = vmul.f32 %v745, %v36
    %v792 = vmul.f32 %v749, %v37
    %v793 = vmul.f32 %v756, %v36
    %v794 = vmul.f32 %v760, %v37
    %v795 = vmul.f32 %v767, %v36
    %v796 = vmul.f32 %v771, %v37
    %v797 = vmul.f32 %v778, %v36
    %v798 = vmul.f32 %v782, %v37
    %v799 = vsel %vm344, %v783, 0.0
    %v800 = vsel %vm344, %v784, 0.0
    %v801 = vadd.f32 %v799, %v800
    %v802 = vrot.slane %v801, 4
    %v803 = vadd.f32 %v801, %v802
    %v804 = vrot.slane %v803, 2
    %v805 = vadd.f32 %v803, %v804
    %v806 = vrot.slane %v805, 1
    %v807 = vadd.f32 %v805, %v806
    %v808 = vsel %vm344, %v785, 0.0
    %v809 = vsel %vm344, %v786, 0.0
    %v810 = vadd.f32 %v808, %v809
    %v811 = vrot.slane %v810, 4
    %v812 = vadd.f32 %v810, %v811
    %v813 = vrot.slane %v812, 2
    %v814 = vadd.f32 %v812, %v813
    %v815 = vrot.slane %v814, 1
    %v816 = vadd.f32 %v814, %v815
    %v817 = vsel %vm344, %v787, 0.0
    %v818 = vsel %vm344, %v788, 0.0
    %v819 = vadd.f32 %v817, %v818
    %v820 = vrot.slane %v819, 4
    %v821 = vadd.f32 %v819, %v820
    %v822 = vrot.slane %v821, 2
    %v823 = vadd.f32 %v821, %v822
    %v824 = vrot.slane %v823, 1
    %v825 = vadd.f32 %v823, %v824
    %v826 = vsel %vm344, %v789, 0.0
    %v827 = vsel %vm344, %v790, 0.0
    %v828 = vadd.f32 %v826, %v827
    %v829 = vrot.slane %v828, 4
    %v830 = vadd.f32 %v828, %v829
    %v831 = vrot.slane %v830, 2
    %v832 = vadd.f32 %v830, %v831
    %v833 = vrot.slane %v832, 1
    %v834 = vadd.f32 %v832, %v833
    %v835 = vsel %vm344, %v791, 0.0
    %v836 = vsel %vm344, %v792, 0.0
    %v837 = vadd.f32 %v835, %v836
    %v838 = vrot.slane %v837, 4
    %v839 = vadd.f32 %v837, %v838
    %v840 = vrot.slane %v839, 2
    %v841 = vadd.f32 %v839, %v840
    %v842 = vrot.slane %v841, 1
    %v843 = vadd.f32 %v841, %v842
    %v844 = vsel %vm344, %v793, 0.0
    %v845 = vsel %vm344, %v794, 0.0
    %v846 = vadd.f32 %v844, %v845
    %v847 = vrot.slane %v846, 4
    %v848 = vadd.f32 %v846, %v847
    %v849 = vrot.slane %v848, 2
    %v850 = vadd.f32 %v848, %v849
    %v851 = vrot.slane %v850, 1
    %v852 = vadd.f32 %v850, %v851
    %v853 = vsel %vm344, %v795, 0.0
    %v854 = vsel %vm344, %v796, 0.0
    %v855 = vadd.f32 %v853, %v854
    %v856 = vrot.slane %v855, 4
    %v857 = vadd.f32 %v855, %v856
    %v858 = vrot.slane %v857, 2
    %v859 = vadd.f32 %v857, %v858
    %v860 = vrot.slane %v859, 1
    %v861 = vadd.f32 %v859, %v860
    %v862 = vsel %vm344, %v797, 0.0
    %v863 = vsel %vm344, %v798, 0.0
    %v864 = vadd.f32 %v862, %v863
    %v865 = vrot.slane %v864, 4
    %v866 = vadd.f32 %v864, %v865
    %v867 = vrot.slane %v866, 2
    %v868 = vadd.f32 %v866, %v867
    %v869 = vrot.slane %v868, 1
    %v870 = vadd.f32 %v868, %v869
    %v872 = vrot.slane %v33, 1
    %v873 = vrot.slane %v33, 2
    %v874 = vrot.slane %v33, 3
    %v879 = vmul.f32 %v807, %v33
    %v880 = vmul.f32 %v816, %v872
    %v881 = vmul.f32 %v825, %v873
    %v882 = vmul.f32 %v834, %v874
    %v883 = vmul.f32 %v843, %v33
    %v884 = vmul.f32 %v852, %v872
    %v885 = vmul.f32 %v861, %v873
    %v886 = vmul.f32 %v870, %v874
    %v895 = vrot.slane %v880, 7
    %v896 = vsel %vm66, %v895, %v879
    %v897 = vrot.slane %v881, 6
    %vm898 = vcmask 1042434
    %v899 = vsel %vm898, %v897, %v896
    %v900 = vrot.slane %v882, 5
    %vm901 = vcmask 1043459
    %v902 = vsel %vm901, %v900, %v899
    %v903 = vrot.slane %v884, 7
    %v904 = vsel %vm66, %v903, %v883
    %v905 = vrot.slane %v885, 6
    %v906 = vsel %vm898, %v905, %v904
    %v907 = vrot.slane %v886, 5
    %v908 = vsel %vm901, %v907, %v906
    %vm911 = vcmask 257024
    %v912 = vsel %vm911, %v902, 0.0
    %v913 = vrot.slane %v912, 4
    %v914 = vadd.f32 %v912, %v913
    %v915 = vrot.slane %v914, 2
    %v916 = vadd.f32 %v914, %v915
    %v917 = vrot.slane %v916, 1
    %v918 = vadd.f32 %v916, %v917
    %v919 = vsel %vm911, %v908, 0.0
    %v920 = vrot.slane %v919, 4
    %v921 = vadd.f32 %v919, %v920
    %v922 = vrot.slane %v921, 2
    %v923 = vadd.f32 %v921, %v922
    %v924 = vrot.slane %v923, 1
    %v925 = vadd.f32 %v923, %v924
    %v926 = vmul.f32 %v918, 0.03125
    %v927 = vmul.f32 %v925, 0.03125
    %v930 = vrot.slane %v367, 7
    %v931 = vsel %vm66, %v930, %v366
    %v933 = vadd.f32 %v106, %v931
    %v936 = vrot.slane %v927, 7
    %v937 = vsel %vm66, %v936, %v926
    %v939 = vadd.f32 %v933, %v937
    %v940 = vlaneseq
    %v941 = vshrl.u32 %v940, 7
    %v942 = vsub.s32 0, %v941
    %v943 = vrot.slane %v32, %v942
    %v944 = vadd.f32 %v939, %v943
    %vm945 = vcmask 254976
    %946 = vst.msk [vmem:[#allocation2] sm:$0x3] %vm945, %v944
    // Predicated region
    $region30: #{tpu_custom_call.1} parent=1 // pred_check
      _
    $region31: #{tpu_custom_call.1} parent=1 // pred_check_branch
      %948 = sbr.rel (0) target = $region33
    $region32: #{tpu_custom_call.1} parent=1 // pred_region
      %s950 = ssub.s32 32, 32
      %951 = vsyncadd [#allocation3], %s950
      %s953 = sshll.u32 [#allocation2], 4
      %s954 = int_to_ptr.vmem [resolvable:$true] %s953
      %956 = dma.vmem_to_hbm [thread:$0]  %s954, 32, %s7, [#allocation3]
    $region33: #{tpu_custom_call.1} parent=1 // pred_fallthru
      _
    // Predicated region
    $region34: #{tpu_custom_call.1} parent=1 // pred_check
      _
    $region35: #{tpu_custom_call.1} parent=1 // pred_check_branch
      %958 = sbr.rel (0) target = $region37
    $region36: #{tpu_custom_call.1} parent=1 // pred_region
      %959 = dma.done [#allocation3], 32
    $region37: #{tpu_custom_call.1} parent=1 // pred_fallthru
      _
    %960 = vsyncpa [#allocation3], 1

</llo_original>
